<compile_context>
chip_gen: v7x
topology: tpu7x:2x2x1
jax: 0.10.0
libtpu: 0.0.40
codegen_flags: <defaults>
</compile_context>

<pallas_src>
import functools

import jax
import jax.numpy as jnp
from jax import lax
from jax.experimental import pallas as pl
from jax.experimental.pallas import tpu as pltpu


# ----------------------------------------------------------------------------
# Hardware-aware knobs
# ----------------------------------------------------------------------------

def _vmem_cap_bytes():
    cap = 128 * 1024 * 1024
    try:
        info = pltpu.get_tpu_info()
        cap = int(getattr(info, "vmem_capacity_bytes", cap))
    except Exception:
        pass
    return cap


def _vmem_limit_bytes():
    # ~75% of physical, capped at 96 MiB (=> 96 MiB on v5e/v6e, 48 MiB on v7x).
    return min(96 * 1024 * 1024, (_vmem_cap_bytes() * 3) // 4)


def _pick_tile(n, preferred):
    for t in preferred:
        if t <= n and n % t == 0:
            return t
    return n


def _pick_q_tile(n):
    # Smaller query tile on v7x (64 MiB VMEM), bigger elsewhere.
    small_vmem = _vmem_cap_bytes() <= 64 * 1024 * 1024
    preferred = (256, 512, 128) if small_vmem else (512, 256, 128)
    return _pick_tile(n, preferred)


# ----------------------------------------------------------------------------
# Kernel 1: fused per-head qkv projection + softmax(q k^T) v  -> ctx (B,H,N,hd)
# ----------------------------------------------------------------------------

def _attn_ctx_kernel(x_ref, wq_ref, wk_ref, wv_ref, ctx_ref,
                     qc_ref, kc_ref, vc_ref):
    """Grid = (B, H, N // TQ).  Per step: one query tile of one head.

    x_ref   : (N, C)      tokens of this batch element (resident per batch)
    wq/wk/wv: (H, C, hd)   per-head projection weights (VMEM-resident; scale
                           already folded into wq)
    ctx_ref : (TQ, hd)     output block: this head's context for this q tile
    qc/kc/vc: (N, hd)      per-(batch, head) projection caches (scratch)
    """
    h = pl.program_id(1)
    qt = pl.program_id(2)
    tq = ctx_ref.shape[0]

    # Project q/k/v for this (batch, head) once, at the first query tile.
    # (The query-tile axis is "arbitrary", so every (b, h) sweep hits qt == 0.)
    @pl.when(qt == 0)
    def _():
        x = x_ref[...]                                               # (N, C)
        qc_ref[...] = jnp.dot(
            x, wq_ref[h], preferred_element_type=jnp.float32).astype(qc_ref.dtype)
        kc_ref[...] = jnp.dot(
            x, wk_ref[h], preferred_element_type=jnp.float32).astype(kc_ref.dtype)
        vc_ref[...] = jnp.dot(
            x, wv_ref[h], preferred_element_type=jnp.float32).astype(vc_ref.dtype)

    q_start = pl.multiple_of(qt * tq, tq)
    q = qc_ref[pl.ds(q_start, tq), :]                                # (TQ, hd)
    k = kc_ref[...]                                                  # (N, hd)
    v = vc_ref[...]                                                  # (N, hd)

    # scores = q @ k^T with input-dtype (MXU-native) operands, f32 accumulate.
    s = lax.dot_general(q, k, (((1,), (1,)), ((), ())),
                        preferred_element_type=jnp.float32)          # (TQ, N)

    # Numerically stable softmax with deferred normalization.
    s = s - jnp.max(s, axis=-1, keepdims=True)
    p = jnp.exp(s)
    l = jnp.sum(p, axis=-1, keepdims=True)                           # (TQ, 1)

    ctx = jnp.dot(p.astype(v.dtype), v,
                  preferred_element_type=jnp.float32)                # (TQ, hd)
    ctx = ctx * pl.reciprocal(l, approx=True)
    ctx_ref[...] = ctx.astype(ctx_ref.dtype)


# ----------------------------------------------------------------------------
# Kernel 2: output projection  out[b, n, :] = sum_h ctx[b, h, n, :] @ wp[h] + b
# ----------------------------------------------------------------------------

def _proj_kernel(ctx_ref, wp_ref, bp_ref, o_ref, acc_ref):
    """Grid = (B, N // TN, H) with the head axis innermost ("arbitrary").

    ctx_ref : (TN, hd)    this head's context rows
    wp_ref  : (H, hd, C)  per-head output-projection weights (VMEM-resident)
    bp_ref  : (1, C)      output-projection bias
    o_ref   : (TN, C)     output block (same block across the head axis)
    acc_ref : (TN, C) f32 accumulator scratch
    """
    h = pl.program_id(2)

    @pl.when(h == 0)
    def _():
        acc_ref[...] = jnp.zeros_like(acc_ref)

    acc_ref[...] += jnp.dot(ctx_ref[...], wp_ref[h],
                            preferred_element_type=jnp.float32)

    @pl.when(h == pl.num_programs(2) - 1)
    def _():
        o_ref[...] = (acc_ref[...]
                      + bp_ref[...].astype(jnp.float32)).astype(o_ref.dtype)


# ----------------------------------------------------------------------------
# Wrappers
# ----------------------------------------------------------------------------

def prepare_attention_params(w_qkv, w_proj, b_proj, *, num_heads):
    """One-time weight re-layout (hoisted out of the per-call hot path).

    w_qkv: (3C, C), w_proj: (C, C) in PyTorch nn.Linear (out, in) layout;
    b_proj: (C,).  The softmax scale is folded into w_q.
    """
    three_c, C = w_qkv.shape
    assert three_c == 3 * C
    assert C % num_heads == 0, "dim should be divisible by num_heads"
    hd = C // num_heads
    scale = jnp.asarray(hd ** -0.5, w_qkv.dtype)

    w = w_qkv.reshape(3, num_heads, hd, C)                  # (3, H, hd, C)
    w_q = jnp.transpose(w[0], (0, 2, 1)) * scale            # (H, C, hd), scaled
    w_k = jnp.transpose(w[1], (0, 2, 1))                    # (H, C, hd)
    w_v = jnp.transpose(w[2], (0, 2, 1))                    # (H, C, hd)
    w_p = jnp.transpose(w_proj).reshape(num_heads, hd, C)   # (H, hd, C)
    b_p = b_proj.reshape(1, C)
    return w_q, w_k, w_v, w_p, b_p


def attention_fwd(x, w_q, w_k, w_v, w_p, b_p, *, q_tile=None):
    """x: (B, N, C); prepared per-head weights from prepare_attention_params."""
    B, N, C = x.shape
    H, _, hd = w_q.shape
    assert H * hd == C

    tq = q_tile if q_tile is not None else _pick_q_tile(N)
    assert N % tq == 0
    tn = _pick_tile(N, (256, 128))
    vmem_limit = _vmem_limit_bytes()

    # ---- fused qkv projection + attention: ctx (B, H, N, hd) in x dtype ----
    ctx = pl.pallas_call(
        _attn_ctx_kernel,
        out_shape=jax.ShapeDtypeStruct((B, H, N, hd), x.dtype),
        grid_spec=pltpu.PrefetchScalarGridSpec(
            num_scalar_prefetch=0,
            grid=(B, H, N // tq),
            in_specs=[
                pl.BlockSpec((None, N, C), lambda b, h, qt: (b, 0, 0)),  # x
                pl.BlockSpec((H, C, hd), lambda b, h, qt: (0, 0, 0)),    # w_q
                pl.BlockSpec((H, C, hd), lambda b, h, qt: (0, 0, 0)),    # w_k
                pl.BlockSpec((H, C, hd), lambda b, h, qt: (0, 0, 0)),    # w_v
            ],
            out_specs=pl.BlockSpec((None, None, tq, hd),
                                   lambda b, h, qt: (b, h, qt, 0)),
            scratch_shapes=[
                pltpu.VMEM((N, hd), x.dtype),   # q cache
                pltpu.VMEM((N, hd), x.dtype),   # k cache
                pltpu.VMEM((N, hd), x.dtype),   # v cache
            ],
        ),
        compiler_params=pltpu.CompilerParams(
            dimension_semantics=("parallel", "parallel", "arbitrary"),
            vmem_limit_bytes=vmem_limit,
        ),
    )(x, w_q, w_k, w_v)

    # ---- output projection over heads + bias: (B, N, C) ----
    out = pl.pallas_call(
        _proj_kernel,
        out_shape=jax.ShapeDtypeStruct((B, N, C), x.dtype),
        grid_spec=pltpu.PrefetchScalarGridSpec(
            num_scalar_prefetch=0,
            grid=(B, N // tn, H),
            in_specs=[
                pl.BlockSpec((None, None, tn, hd),
                             lambda b, nt, h: (b, h, nt, 0)),            # ctx
                pl.BlockSpec((H, hd, C), lambda b, nt, h: (0, 0, 0)),    # w_p
                pl.BlockSpec((1, C), lambda b, nt, h: (0, 0)),           # bias
            ],
            out_specs=pl.BlockSpec((None, tn, C), lambda b, nt, h: (b, nt, 0)),
            scratch_shapes=[pltpu.VMEM((tn, C), jnp.float32)],
        ),
        compiler_params=pltpu.CompilerParams(
            dimension_semantics=("parallel", "parallel", "arbitrary"),
            vmem_limit_bytes=vmem_limit,
        ),
    )(ctx, w_p, b_p)
    return out


def attention(x, w_qkv, w_proj, b_proj, *, num_heads, q_tile=None):
    """Convenience wrapper: PyTorch-layout params -> forward pass."""
    params = prepare_attention_params(w_qkv, w_proj, b_proj, num_heads=num_heads)
    return attention_fwd(x, *params, q_tile=q_tile)


# ----------------------------------------------------------------------------
# Pure-JAX reference (mirror of the PyTorch Attention.forward)
# ----------------------------------------------------------------------------

def reference(x, w_qkv, w_proj, b_proj, num_heads):
    B, N, C = x.shape
    hd = C // num_heads
    scale = hd ** -0.5
    qkv = x @ jnp.transpose(w_qkv)                                   # (B, N, 3C)
    qkv = qkv.reshape(B, N, 3, num_heads, hd)
    qkv = jnp.transpose(qkv, (2, 0, 3, 1, 4))                        # (3,B,H,N,hd)
    q, k, v = qkv[0], qkv[1], qkv[2]
    q = q * scale
    attn = q @ jnp.swapaxes(k, -2, -1)                               # (B,H,N,N)
    attn = jax.nn.softmax(attn, axis=-1)
    out = attn @ v                                                   # (B,H,N,hd)
    out = jnp.transpose(out, (0, 2, 1, 3)).reshape(B, N, C)
    return out @ jnp.transpose(w_proj) + b_proj


# ----------------------------------------------------------------------------
# Test harness
# ----------------------------------------------------------------------------

def _run_case(key, B, N, C, num_heads, q_tile=None):
    kx, k1, k2, k3 = jax.random.split(key, 4)
    x = jax.random.normal(kx, (B, N, C), dtype=jnp.float32)
    # Parameters in PyTorch nn.Linear layout: weight (out_features, in_features).
    w_qkv = jax.random.normal(k1, (3 * C, C), dtype=jnp.float32) * 0.05
    w_proj = jax.random.normal(k2, (C, C), dtype=jnp.float32) * 0.05
    b_proj = jax.random.normal(k3, (C,), dtype=jnp.float32) * 0.05

    params = prepare_attention_params(w_qkv, w_proj, b_proj, num_heads=num_heads)
    out = attention_fwd(x, *params, q_tile=q_tile)
    out = jax.block_until_ready(out)

    ref = reference(x, w_qkv, w_proj, b_proj, num_heads)
    assert out.shape == (B, N, C)
    assert jnp.allclose(out, ref, atol=2e-3, rtol=2e-3), (
        f"mismatch vs reference (B={B}, N={N}, C={C}, H={num_heads}): "
        f"max abs err {float(jnp.max(jnp.abs(out - ref)))}")


if __name__ == "__main__":
    key = jax.random.PRNGKey(0)
    k0, k1 = jax.random.split(key)

    # Small shapes consistent with the module (B, seq N, dim C, heads).
    _run_case(k0, B=2, N=8, C=32, num_heads=8)
    # A tile-aligned case that exercises query tiling (QT = 2) and the
    # per-(batch, head) q/k/v cache reuse path.
    _run_case(k1, B=2, N=256, C=128, num_heads=4, q_tile=128)

    print("KERNEL_OK")
</pallas_src>

<mosaic_0001>
module attributes {stable_mosaic.version = 11 : i64} {
  func.func @_attn_ctx_kernel(%arg0: i32, %arg1: i32, %arg2: i32, %arg3: memref<1x8x32xf32, #tpu.memory_space<vmem>>, %arg4: memref<8x32x4xf32, #tpu.memory_space<vmem>>, %arg5: memref<8x32x4xf32, #tpu.memory_space<vmem>>, %arg6: memref<8x32x4xf32, #tpu.memory_space<vmem>>, %arg7: memref<1x1x8x4xf32, #tpu.memory_space<vmem>>, %arg8: memref<8x4xf32, #tpu.memory_space<vmem>>, %arg9: memref<8x4xf32, #tpu.memory_space<vmem>>, %arg10: memref<8x4xf32, #tpu.memory_space<vmem>>) attributes {dimension_semantics = [#tpu.dimension_semantics<parallel>, #tpu.dimension_semantics<parallel>, #tpu.dimension_semantics<arbitrary>], iteration_bounds = array<i64: 2, 8, 1>, scalar_prefetch = 0 : i64, scratch_operands = 3 : i64, tpu.core_type = #tpu.core_type<tc>, window_params = [{transform_indices = @transform_0, window_bounds = array<i64: 1, 8, 32>}, {pipeline_mode = #tpu.pipeline_mode<synchronous>, transform_indices = @transform_1, window_bounds = array<i64: 8, 32, 4>}, {pipeline_mode = #tpu.pipeline_mode<synchronous>, transform_indices = @transform_2, window_bounds = array<i64: 8, 32, 4>}, {pipeline_mode = #tpu.pipeline_mode<synchronous>, transform_indices = @transform_3, window_bounds = array<i64: 8, 32, 4>}, {transform_indices = @transform_4, window_bounds = array<i64: 1, 1, 8, 4>}]} {
    %c0_i32 = arith.constant 0 : i32
    %0 = arith.cmpi eq, %arg2, %c0_i32 : i32
    %1 = arith.extui %0 : i1 to i32
    %c0_i32_0 = arith.constant 0 : i32
    %2 = arith.cmpi ne, %1, %c0_i32_0 : i32
    scf.if %2 {
      %c0_12 = arith.constant 0 : index
      %c0_13 = arith.constant 0 : index
      %c0_14 = arith.constant 0 : index
      %24 = vector.load %arg3[%c0_12, %c0_13, %c0_14] : memref<1x8x32xf32, #tpu.memory_space<vmem>>, vector<1x8x32xf32>
      %25 = vector.shape_cast %24 : vector<1x8x32xf32> to vector<8x32xf32>
      %26 = arith.index_cast %arg1 : i32 to index
      %c0_15 = arith.constant 0 : index
      %c0_16 = arith.constant 0 : index
      %27 = vector.load %arg4[%26, %c0_15, %c0_16] : memref<8x32x4xf32, #tpu.memory_space<vmem>>, vector<1x32x4xf32>
      %28 = vector.shape_cast %27 : vector<1x32x4xf32> to vector<32x4xf32>
      %cst_17 = arith.constant dense<0.000000e+00> : vector<8x4xf32>
      %29 = tpu.matmul %25, %28, %cst_17 {dimension_numbers = #tpu.dot_dimension_numbers<[1], [0], [0], [1], [0, 0, 1, 1], [], []>} : vector<8x32xf32>, vector<32x4xf32>, vector<8x4xf32> -> vector<8x4xf32>
      %c0_18 = arith.constant 0 : index
      %c0_19 = arith.constant 0 : index
      %30 = vector.load %arg8[%c0_18, %c0_19] : memref<8x4xf32, #tpu.memory_space<vmem>>, vector<8x4xf32>
      tpu.vector_store %arg8[%c0_18, %c0_19], %29 {strides = array<i32>} : memref<8x4xf32, #tpu.memory_space<vmem>>, vector<8x4xf32>,
      %31 = arith.index_cast %arg1 : i32 to index
      %c0_20 = arith.constant 0 : index
      %c0_21 = arith.constant 0 : index
      %32 = vector.load %arg5[%31, %c0_20, %c0_21] : memref<8x32x4xf32, #tpu.memory_space<vmem>>, vector<1x32x4xf32>
      %33 = vector.shape_cast %32 : vector<1x32x4xf32> to vector<32x4xf32>
      %cst_22 = arith.constant dense<0.000000e+00> : vector<8x4xf32>
      %34 = tpu.matmul %25, %33, %cst_22 {dimension_numbers = #tpu.dot_dimension_numbers<[1], [0], [0], [1], [0, 0, 1, 1], [], []>} : vector<8x32xf32>, vector<32x4xf32>, vector<8x4xf32> -> vector<8x4xf32>
      %c0_23 = arith.constant 0 : index
      %c0_24 = arith.constant 0 : index
      %35 = vector.load %arg9[%c0_23, %c0_24] : memref<8x4xf32, #tpu.memory_space<vmem>>, vector<8x4xf32>
      tpu.vector_store %arg9[%c0_23, %c0_24], %34 {strides = array<i32>} : memref<8x4xf32, #tpu.memory_space<vmem>>, vector<8x4xf32>,
      %36 = arith.index_cast %arg1 : i32 to index
      %c0_25 = arith.constant 0 : index
      %c0_26 = arith.constant 0 : index
      %37 = vector.load %arg6[%36, %c0_25, %c0_26] : memref<8x32x4xf32, #tpu.memory_space<vmem>>, vector<1x32x4xf32>
      %38 = vector.shape_cast %37 : vector<1x32x4xf32> to vector<32x4xf32>
      %cst_27 = arith.constant dense<0.000000e+00> : vector<8x4xf32>
      %39 = tpu.matmul %25, %38, %cst_27 {dimension_numbers = #tpu.dot_dimension_numbers<[1], [0], [0], [1], [0, 0, 1, 1], [], []>} : vector<8x32xf32>, vector<32x4xf32>, vector<8x4xf32> -> vector<8x4xf32>
      %c0_28 = arith.constant 0 : index
      %c0_29 = arith.constant 0 : index
      %40 = vector.load %arg10[%c0_28, %c0_29] : memref<8x4xf32, #tpu.memory_space<vmem>>, vector<8x4xf32>
      tpu.vector_store %arg10[%c0_28, %c0_29], %39 {strides = array<i32>} : memref<8x4xf32, #tpu.memory_space<vmem>>, vector<8x4xf32>,
    } else {
    }
    %c8_i32 = arith.constant 8 : i32
    %3 = arith.muli %arg2, %c8_i32 : i32
    %4 = tpu.assume_multiple %3, 8 : i32
    %5 = arith.index_cast %4 : i32 to index
    %c0 = arith.constant 0 : index
    %6 = vector.load %arg8[%5, %c0] : memref<8x4xf32, #tpu.memory_space<vmem>>, vector<8x4xf32>
    %c0_1 = arith.constant 0 : index
    %c0_2 = arith.constant 0 : index
    %7 = vector.load %arg9[%c0_1, %c0_2] : memref<8x4xf32, #tpu.memory_space<vmem>>, vector<8x4xf32>
    %c0_3 = arith.constant 0 : index
    %c0_4 = arith.constant 0 : index
    %8 = vector.load %arg10[%c0_3, %c0_4] : memref<8x4xf32, #tpu.memory_space<vmem>>, vector<8x4xf32>
    %cst = arith.constant dense<0.000000e+00> : vector<8x8xf32>
    %9 = tpu.matmul %6, %7, %cst {dimension_numbers = #tpu.dot_dimension_numbers<[1], [1], [0], [0], [0, 0, 1, 0], [], []>} : vector<8x4xf32>, vector<8x4xf32>, vector<8x8xf32> -> vector<8x8xf32>
    %cst_5 = arith.constant dense<0xFF800000> : vector<8xf32>
    %10 = vector.multi_reduction <maximumf>, %9, %cst_5 [1] : vector<8x8xf32> to vector<8xf32>
    %11 = vector.shape_cast %10 : vector<8xf32> to vector<8x1xf32>
    %12 = vector.broadcast %11 : vector<8x1xf32> to vector<8x8xf32>
    %13 = arith.subf %9, %12 : vector<8x8xf32>
    %14 = math.exp %13 : vector<8x8xf32>
    %cst_6 = arith.constant dense<0.000000e+00> : vector<8xf32>
    %15 = vector.multi_reduction <add>, %14, %cst_6 [1] : vector<8x8xf32> to vector<8xf32>
    %16 = vector.shape_cast %15 : vector<8xf32> to vector<8x1xf32>
    %cst_7 = arith.constant dense<0.000000e+00> : vector<8x4xf32>
    %17 = tpu.matmul %14, %8, %cst_7 {dimension_numbers = #tpu.dot_dimension_numbers<[1], [0], [0], [1], [0, 0, 1, 1], [], []>} : vector<8x8xf32>, vector<8x4xf32>, vector<8x4xf32> -> vector<8x4xf32>
    %18 = tpu.reciprocal %16 {approx = true} : vector<8x1xf32> -> vector<8x1xf32>
    %19 = vector.broadcast %18 : vector<8x1xf32> to vector<8x4xf32>
    %20 = arith.mulf %17, %19 : vector<8x4xf32>
    %c0_8 = arith.constant 0 : index
    %c0_9 = arith.constant 0 : index
    %c0_10 = arith.constant 0 : index
    %c0_11 = arith.constant 0 : index
    %21 = vector.load %arg7[%c0_8, %c0_9, %c0_10, %c0_11] : memref<1x1x8x4xf32, #tpu.memory_space<vmem>>, vector<1x1x8x4xf32>
    %22 = vector.shape_cast %21 : vector<1x1x8x4xf32> to vector<8x4xf32>
    %23 = vector.shape_cast %20 : vector<8x4xf32> to vector<1x1x8x4xf32>
    tpu.vector_store %arg7[%c0_8, %c0_9, %c0_10, %c0_11], %23 {strides = array<i32>} : memref<1x1x8x4xf32, #tpu.memory_space<vmem>>, vector<1x1x8x4xf32>,
    return
  }
  func.func @transform_0(%arg0: i32, %arg1: i32, %arg2: i32) -> (i32, i32, i32) {
    %c0_i32 = arith.constant 0 : i32
    %c0_i32_0 = arith.constant 0 : i32
    %c0_i32_1 = arith.constant 0 : i32
    return %arg0, %c0_i32, %c0_i32_0 : i32, i32, i32
  }
  func.func @transform_1(%arg0: i32, %arg1: i32, %arg2: i32) -> (i32, i32, i32) {
    %c0_i32 = arith.constant 0 : i32
    %c0_i32_0 = arith.constant 0 : i32
    %c0_i32_1 = arith.constant 0 : i32
    %c0_i32_2 = arith.constant 0 : i32
    return %c0_i32, %c0_i32_0, %c0_i32_1 : i32, i32, i32
  }
  func.func @transform_2(%arg0: i32, %arg1: i32, %arg2: i32) -> (i32, i32, i32) {
    %c0_i32 = arith.constant 0 : i32
    %c0_i32_0 = arith.constant 0 : i32
    %c0_i32_1 = arith.constant 0 : i32
    %c0_i32_2 = arith.constant 0 : i32
    return %c0_i32, %c0_i32_0, %c0_i32_1 : i32, i32, i32
  }
  func.func @transform_3(%arg0: i32, %arg1: i32, %arg2: i32) -> (i32, i32, i32) {
    %c0_i32 = arith.constant 0 : i32
    %c0_i32_0 = arith.constant 0 : i32
    %c0_i32_1 = arith.constant 0 : i32
    %c0_i32_2 = arith.constant 0 : i32
    return %c0_i32, %c0_i32_0, %c0_i32_1 : i32, i32, i32
  }
  func.func @transform_4(%arg0: i32, %arg1: i32, %arg2: i32) -> (i32, i32, i32, i32) {
    %c0_i32 = arith.constant 0 : i32
    %c0_i32_0 = arith.constant 0 : i32
    return %arg0, %arg1, %arg2, %c0_i32 : i32, i32, i32, i32
  }
}

</mosaic_0001>

<llo_original>
// kernel: tpu_custom_call.1
$region0: #{tpu_custom_call.1}
  #allocation0 [shape = 'u32[]', space=smem, size = 0x4, offset = 0x4, fixed_abs, tag = 'smem constant byte address 0x4 - core index']
  #allocation1 [shape = 'u32[144,128]{1,0:T(1,128)}', space=vmem, size = 0x12000, scoped, tag = 'internal scratch']
  #allocation2 [shape = 'f32[8,4]{1,0:T(8,128)}', space=vmem, size = 0x1000, scoped, tag = 'scratch operand']
  #allocation3 [shape = 'f32[8,4]{1,0:T(8,128)}', space=vmem, size = 0x1000, scoped, tag = 'scratch operand']
  #allocation4 [shape = 'f32[8,4]{1,0:T(8,128)}', space=vmem, size = 0x1000, scoped, tag = 'scratch operand']
  %s0 = inlined_call_operand.hbm [shape: f32[2,8,32], index: 0, kind: input, shape index: {}]
  %s1 = inlined_call_operand.hbm [shape: f32[8,32,4], index: 1, kind: input, shape index: {}]
  %s2 = inlined_call_operand.hbm [shape: f32[8,32,4], index: 2, kind: input, shape index: {}]
  %s3 = inlined_call_operand.hbm [shape: f32[8,32,4], index: 3, kind: input, shape index: {}]
  %s4 = inlined_call_operand.hbm [shape: f32[2,8,8,4], index: 4, kind: output, shape index: {}]
  %s5 = sld [smem:[#allocation0]]
  $region69: #{tpu_custom_call.1} parent=0
    _
  %s7 = ssub.s32 1, %s5
  %s8 = scalar_select 0, %s7, %s5
  $region1: #{tpu_custom_call.1} parent=0
    #allocation5 [shape = 'u8[8192]{0}', space=vmem, size = 0x2000, scoped, tag = 'input window, operand 0']
    #allocation6 [shape = 's32[2]{0}', space=sflag, size = 0x8, scoped, tag = 'scoped memory for tpu_custom_call.1']
    #allocation7 [shape = 's32[2]{0}', space=sflag, size = 0x8, scoped, tag = 'scoped memory for tpu_custom_call.1']
    #allocation8 [shape = 'u8[131072]{0}', space=vmem, size = 0x20000, scoped, tag = 'input window, operand 1, single buffered']
    #allocation9 [shape = 's32[1]{0}', space=sflag, size = 0x4, scoped, tag = 'scoped memory for tpu_custom_call.1']
    #allocation10 [shape = 'u8[131072]{0}', space=vmem, size = 0x20000, scoped, tag = 'input window, operand 2, single buffered']
    #allocation11 [shape = 'u8[131072]{0}', space=vmem, size = 0x20000, scoped, tag = 'input window, operand 3, single buffered']
    #allocation12 [shape = 's32[1]{0}', space=sflag, size = 0x4, scoped, tag = 'scoped memory for tpu_custom_call.1']
    #allocation13 [shape = 'u8[8192]{0}', space=vmem, size = 0x2000, scoped, tag = 'output window, operand 0']
    %9 = vsyncpa [#allocation6], 0
    %s10 = scalar_lea.sflag [#allocation6], 1
    %11 = vsyncpa %s10, 0
    %12 = vsyncpa [#allocation9], 0
    %13 = vsyncpa [#allocation12], 0
    %14 = vsyncpa [#allocation7], 0
    %s15 = scalar_lea.sflag [#allocation7], 1
    %16 = vsyncpa %s15, 0
    loop: start=0, step=1, limit=18
    $region2: #{tpu_custom_call.1} parent=1 // loop_pre_header
      _
    $region3: #{tpu_custom_call.1} parent=1 // loop_header
      %s18 = sphi 0, %s22
      %p19 = scmp.ge.s32.totalorder %s18, 18
      %s25 = sphi 0, %s44
      %s26 = sphi 0, %s40
      %s27 = sphi 0, %s36
      %s28 = sphi 0, %s25
      %s29 = sphi 0, %s26
      %s30 = sphi 0, %s27
      %s31 = sphi 0, %s28
      %s32 = sphi 0, %s29
      %s33 = sphi 0, %s30
      %s47 = sphi 0, %s49
      %s50 = sphi 0, %s47
      %s51 = sphi 0, %s50
      %s67 = sphi 0, %s51
      %s71 = sphi 0, %s71
      %s73 = sphi 0, %s71
      %s74 = sphi 0, %s73
      %s88 = sphi 0, %s74
      %s92 = sphi 0, %s92
      %s94 = sphi 0, %s92
      %s95 = sphi 0, %s94
      %s109 = sphi 0, %s95
      %s113 = sphi 0, %s113
      %s115 = sphi 0, %s113
      %s116 = sphi 0, %s115
      %s130 = sphi 0, %s116
      %s140 = sphi 0, %s142
      %s143 = sphi 0, %s140
      %s144 = sphi 0, %s143
      %s160 = sphi 0, %s144
    $region4: #{tpu_custom_call.1} parent=1 // loop_header_branch
      %21 = sbr.rel (%p19) target = $region8
    $region5: #{tpu_custom_call.1} parent=1 // loop_body
      %s23 = ssub.s32 %s18, 1
      %s24 = ssub.s32 %s18, 2
      %s34 = sadd.s32 1, %s27
      %p35 = scmp.ge.s32.totalorder %s34, 1
      %s36 = scalar_select %p35, 0, %s34
      %s37 = sadd.s32 1, %s26
      %s38 = scalar_select %p35, %s37, %s26
      %p39 = scmp.ge.s32.totalorder %s38, 8
      %s40 = scalar_select %p39, 0, %s38
      %s41 = sadd.s32 1, %s25
      %s42 = scalar_select %p39, %s41, %s25
      %p43 = scmp.ge.s32.totalorder %s42, 2
      %s44 = scalar_select %p43, 0, %s42
      %s45 = ssub.s32 %s25, %s44
      %p46 = scmp.eq.s32.totalorder %s45, 0
      %s48 = sadd.s32 %s47, 1
      %s49 = scalar_select %p46, %s47, %s48
      %p52 = pneg %p46
      %p53 = scmp.eq.s32.totalorder %s18, 15
      %p54 = por %p52, %p53
      %p55 = scmp.ne.s32.totalorder %s47, %s50
      %p56 = scmp.eq.s32.totalorder %s18, 0
      %p57 = por %p55, %p56
      %p58 = scmp.ne.s32.totalorder %s47, %s50
      %p59 = scmp.eq.s32.totalorder %s23, 15
      %p60 = por %p58, %p59
      %p61 = scmp.ne.s32.totalorder %s50, %s51
      %p62 = scmp.eq.s32.totalorder %s23, 0
      %p63 = por %p61, %p62
      %p64 = scmp.ne.s32.totalorder %s50, %s51
      %p65 = scmp.eq.s32.totalorder %s24, 15
      %p66 = por %p64, %p65
      %p68 = scmp.ne.s32.totalorder %s51, %s67
      %p69 = scmp.eq.s32.totalorder %s24, 0
      %p70 = por %p68, %p69
      %s72 = sadd.s32 %s71, 1
      %p75 = scmp.eq.s32.totalorder %s18, 15
      %p76 = scmp.ne.s32.totalorder %s71, %s73
      %p77 = scmp.eq.s32.totalorder %s18, 0
      %p78 = por %p76, %p77
      %p79 = scmp.ne.s32.totalorder %s71, %s73
      %p80 = scmp.eq.s32.totalorder %s23, 15
      %p81 = por %p79, %p80
      %p82 = scmp.ne.s32.totalorder %s73, %s74
      %p83 = scmp.eq.s32.totalorder %s23, 0
      %p84 = por %p82, %p83
      %p85 = scmp.ne.s32.totalorder %s73, %s74
      %p86 = scmp.eq.s32.totalorder %s24, 15
      %p87 = por %p85, %p86
      %p89 = scmp.ne.s32.totalorder %s74, %s88
      %p90 = scmp.eq.s32.totalorder %s24, 0
      %p91 = por %p89, %p90
      %s93 = sadd.s32 %s92, 1
      %p96 = scmp.eq.s32.totalorder %s18, 15
      %p97 = scmp.ne.s32.totalorder %s92, %s94
      %p98 = scmp.eq.s32.totalorder %s18, 0
      %p99 = por %p97, %p98
      %p100 = scmp.ne.s32.totalorder %s92, %s94
      %p101 = scmp.eq.s32.totalorder %s23, 15
      %p102 = por %p100, %p101
      %p103 = scmp.ne.s32.totalorder %s94, %s95
      %p104 = scmp.eq.s32.totalorder %s23, 0
      %p105 = por %p103, %p104
      %p106 = scmp.ne.s32.totalorder %s94, %s95
      %p107 = scmp.eq.s32.totalorder %s24, 15
      %p108 = por %p106, %p107
      %p110 = scmp.ne.s32.totalorder %s95, %s109
      %p111 = scmp.eq.s32.totalorder %s24, 0
      %p112 = por %p110, %p111
      %s114 = sadd.s32 %s113, 1
      %p117 = scmp.eq.s32.totalorder %s18, 15
      %p118 = scmp.ne.s32.totalorder %s113, %s115
      %p119 = scmp.eq.s32.totalorder %s18, 0
      %p120 = por %p118, %p119
      %p121 = scmp.ne.s32.totalorder %s113, %s115
      %p122 = scmp.eq.s32.totalorder %s23, 15
      %p123 = por %p121, %p122
      %p124 = scmp.ne.s32.totalorder %s115, %s116
      %p125 = scmp.eq.s32.totalorder %s23, 0
      %p126 = por %p124, %p125
      %p127 = scmp.ne.s32.totalorder %s115, %s116
      %p128 = scmp.eq.s32.totalorder %s24, 15
      %p129 = por %p127, %p128
      %p131 = scmp.ne.s32.totalorder %s116, %s130
      %p132 = scmp.eq.s32.totalorder %s24, 0
      %p133 = por %p131, %p132
      %s134 = ssub.s32 %s25, %s44
      %s135 = ssub.s32 %s26, %s40
      %s136 = sor.u32 %s134, %s135
      %s137 = ssub.s32 %s27, %s36
      %s138 = sor.u32 %s136, %s137
      %p139 = scmp.eq.s32.totalorder %s138, 0
      %s141 = sadd.s32 %s140, 1
      %s142 = scalar_select %p139, %s140, %s141
      %p145 = pneg %p139
      %p146 = scmp.eq.s32.totalorder %s18, 15
      %p147 = por %p145, %p146
      %p148 = scmp.ne.s32.totalorder %s140, %s143
      %p149 = scmp.eq.s32.totalorder %s18, 0
      %p150 = por %p148, %p149
      %p151 = scmp.ne.s32.totalorder %s140, %s143
      %p152 = scmp.eq.s32.totalorder %s23, 15
      %p153 = por %p151, %p152
      %p154 = scmp.ne.s32.totalorder %s143, %s144
      %p155 = scmp.eq.s32.totalorder %s23, 0
      %p156 = por %p154, %p155
      %p157 = scmp.ne.s32.totalorder %s143, %s144
      %p158 = scmp.eq.s32.totalorder %s24, 15
      %p159 = por %p157, %p158
      %p161 = scmp.ne.s32.totalorder %s144, %s160
      %p162 = scmp.eq.s32.totalorder %s24, 0
      %p163 = por %p161, %p162
      %p164 = scmp.le.s32.totalorder 1, %s18
      %p165 = scmp.lt.s32.totalorder %s18, 17
      %p166 = pnand %p164, %p165
      %p167 = pneg %p166
      // Predicated region
      $region9: #{tpu_custom_call.1} parent=5 // pred_check
        _
      $region10: #{tpu_custom_call.1} parent=5 // pred_check_branch
        %169 = sbr.rel (%p166) target = $region12
      $region11: #{tpu_custom_call.1} parent=5 // pred_region
        %s170 = ssub.s32 %s18, 1
        // Predicated region
        $region13: #{tpu_custom_call.1} parent=11 // pred_check
          %p171 = pneg %p84
        $region14: #{tpu_custom_call.1} parent=11 // pred_check_branch
          %173 = sbr.rel (%p171) target = $region16
        $region15: #{tpu_custom_call.1} parent=11 // pred_region
          %s175 = ssub.s32 4096, 4096
          %176 = vsyncadd [#allocation9], %s175
          %s177 = sshll.u32 [#allocation8], 4
          %s178 = int_to_ptr.vmem [resolvable:$true] %s177
          %183 = dma.hbm_to_vmem [thread:$0]  %s1, 4096, %s178, [#allocation9], 128, 128, 8
        $region16: #{tpu_custom_call.1} parent=11 // pred_fallthru
          _
        // Predicated region
        $region17: #{tpu_custom_call.1} parent=11 // pred_check
          %p184 = pneg %p105
        $region18: #{tpu_custom_call.1} parent=11 // pred_check_branch
          %186 = sbr.rel (%p184) target = $region20
        $region19: #{tpu_custom_call.1} parent=11 // pred_region
          %s188 = ssub.s32 4096, 4096
          %189 = vsyncadd [#allocation9], %s188
          %s190 = sshll.u32 [#allocation10], 4
          %s191 = int_to_ptr.vmem [resolvable:$true] %s190
          %196 = dma.hbm_to_vmem [thread:$0]  %s2, 4096, %s191, [#allocation9], 128, 128, 8
        $region20: #{tpu_custom_call.1} parent=11 // pred_fallthru
          _
        // Predicated region
        $region21: #{tpu_custom_call.1} parent=11 // pred_check
          %p197 = pneg %p126
        $region22: #{tpu_custom_call.1} parent=11 // pred_check_branch
          %199 = sbr.rel (%p197) target = $region24
        $region23: #{tpu_custom_call.1} parent=11 // pred_region
          %s201 = ssub.s32 4096, 4096
          %202 = vsyncadd [#allocation12], %s201
          %s203 = sshll.u32 [#allocation11], 4
          %s204 = int_to_ptr.vmem [resolvable:$true] %s203
          %209 = dma.hbm_to_vmem [thread:$0]  %s3, 4096, %s204, [#allocation12], 128, 128, 8
        $region24: #{tpu_custom_call.1} parent=11 // pred_fallthru
          _
      $region12: #{tpu_custom_call.1} parent=5 // pred_fallthru
        _
      %p210 = scmp.lt.s32.totalorder %s18, 16
      // Predicated region
      $region25: #{tpu_custom_call.1} parent=5 // pred_check
        %p211 = pneg %p210
      $region26: #{tpu_custom_call.1} parent=5 // pred_check_branch
        %213 = sbr.rel (%p211) target = $region28
      $region27: #{tpu_custom_call.1} parent=5 // pred_region
        // Predicated region
        $region29: #{tpu_custom_call.1} parent=27 // pred_check
          %p214 = pneg %p57
        $region30: #{tpu_custom_call.1} parent=27 // pred_check_branch
          %216 = sbr.rel (%p214) target = $region32
        $region31: #{tpu_custom_call.1} parent=27 // pred_region
          %s217 = sand.u32 %s47, 1
          %s218 = scalar_lea.sflag [#allocation6], %s217
          %s219 = sand.u32 %s47, 1
          %s220 = smul.addr %s219, 8
          %s221 = scalar_lea.vmem [#allocation5], %s220
          %s223 = ssub.s32 128, 128
          %224 = vsyncadd %s218, %s223
          %s225 = smul.addr %s25, 128
          %s226 = scalar_lea.hbm %s0, %s225
          %s228 = sshll.u32 %s221, 4
          %s229 = int_to_ptr.vmem [resolvable:$true] %s228
          %231 = dma.hbm_to_vmem [thread:$0]  %s226, 128, %s229, %s218
        $region32: #{tpu_custom_call.1} parent=27 // pred_fallthru
          _
      $region28: #{tpu_custom_call.1} parent=5 // pred_fallthru
        _
      %p232 = scmp.le.s32.totalorder 1, %s18
      %p233 = scmp.lt.s32.totalorder %s18, 17
      %p234 = pnand %p232, %p233
      %p235 = pneg %p234
      // Predicated region
      $region33: #{tpu_custom_call.1} parent=5 // pred_check
        _
      $region34: #{tpu_custom_call.1} parent=5 // pred_check_branch
        %237 = sbr.rel (%p234) target = $region36
      $region35: #{tpu_custom_call.1} parent=5 // pred_region
        %s238 = ssub.s32 %s18, 1
        %s239 = sand.u32 %s50, 1
        %s240 = scalar_lea.sflag [#allocation6], %s239
        %s241 = sand.u32 %s50, 1
        %s242 = smul.addr %s241, 8
        %s243 = scalar_lea.vmem [#allocation5], %s242
        // Predicated region
        $region37: #{tpu_custom_call.1} parent=35 // pred_check
          %p244 = pneg %p63
        $region38: #{tpu_custom_call.1} parent=35 // pred_check_branch
          %246 = sbr.rel (%p244) target = $region40
        $region39: #{tpu_custom_call.1} parent=35 // pred_region
          %247 = dma.done %s240, 128
        $region40: #{tpu_custom_call.1} parent=35 // pred_fallthru
          _
        // Predicated region
        $region41: #{tpu_custom_call.1} parent=35 // pred_check
          %p248 = pneg %p84
        $region42: #{tpu_custom_call.1} parent=35 // pred_check_branch
          %250 = sbr.rel (%p248) target = $region44
        $region43: #{tpu_custom_call.1} parent=35 // pred_region
          %251 = dma.done [#allocation9], 4096
        $region44: #{tpu_custom_call.1} parent=35 // pred_fallthru
          _
        // Predicated region
        $region45: #{tpu_custom_call.1} parent=35 // pred_check
          %p252 = pneg %p105
        $region46: #{tpu_custom_call.1} parent=35 // pred_check_branch
          %254 = sbr.rel (%p252) target = $region48
        $region47: #{tpu_custom_call.1} parent=35 // pred_region
          %255 = dma.done [#allocation9], 4096
        $region48: #{tpu_custom_call.1} parent=35 // pred_fallthru
          _
        // Predicated region
        $region49: #{tpu_custom_call.1} parent=35 // pred_check
          %p256 = pneg %p126
        $region50: #{tpu_custom_call.1} parent=35 // pred_check_branch
          %258 = sbr.rel (%p256) target = $region52
        $region51: #{tpu_custom_call.1} parent=35 // pred_region
          %259 = dma.done [#allocation12], 4096
        $region52: #{tpu_custom_call.1} parent=35 // pred_fallthru
          _
        %s260 = sand.u32 %s50, 1
        %s261 = scalar_lea.sflag [#allocation6], %s260
        %s262 = sand.u32 %s50, 1
        %s263 = smul.addr %s262, 8
        %s264 = scalar_lea.vmem [#allocation5], %s263
        %p265 = pneg %p63
        %p266 = pneg %p60
        %p267 = pneg %p84
        %p268 = pneg %p81
        %p269 = pneg %p105
        %p270 = pneg %p102
        %p271 = pneg %p126
        %p272 = pneg %p123
        %p273 = pneg %p156
        %p274 = pneg %p153
        %s275 = sand.u32 %s143, 1
        %s276 = scalar_lea.sflag [#allocation7], %s275
        %s277 = sand.u32 %s143, 1
        %s278 = smul.addr %s277, 8
        %s279 = scalar_lea.vmem [#allocation13], %s278
        %p280 = scmp.eq.s32.totalorder %s30, 0
        // Predicated region
        $region53: #{tpu_custom_call.1} parent=35 // pred_check
          %p281 = pneg %p280
        $region54: #{tpu_custom_call.1} parent=35 // pred_check_branch
          %283 = sbr.rel (%p281) target = $region56
        $region55: #{tpu_custom_call.1} parent=35 // pred_region
          %v284 = vld [vmem:[%s243] sm:$0xff]
          %s285 = smul.u32 %s29, 32
          %s286 = scalar_lea.vmem [#allocation8], %s285
          %v287 = vld [vmem:[%s286] sm:$0xff]
          %v288 = vld [vmem:[%s286 + $0x8] sm:$0xff]
          %v289 = vld [vmem:[%s286 + $0x10] sm:$0xff]
          %v290 = vld [vmem:[%s286 + $0x18] sm:$0xff]
          %vm291 = vcmask 261120
          %v293 = vsel %vm291, %v284, 0
          %295 = vmatprep.subr.mxu0 0.0
          %296 = vmatpush1.msra.mxu0 %v287
          %297 = vmatprep.subr.mxu0 0.0
          %298 = vmatpush1.msra.mxu0 %v288
          %299 = vmatprep.subr.mxu0 0.0
          %300 = vmatpush1.msra.mxu0 %v289
          %301 = vmatprep.subr.mxu0 0.0
          %302 = vmatpush1.msra.mxu0 %v290
          %303 = vmatprep.subr.mxu0 0.0
          %304 = vmatpush1.msra.mxu0 0.0
          %305 = vmatprep.subr.mxu0 0.0
          %306 = vmatpush1.msra.mxu0 0.0
          %307 = vmatprep.subr.mxu0 0.0
          %308 = vmatpush1.msra.mxu0 0.0
          %309 = vmatprep.subr.mxu0 0.0
          %310 = vmatpush1.msra.mxu0 0.0
          %311 = vmatprep.subr.mxu0 0.0
          %312 = vmatpush1.msra.mxu0 0.0
          %313 = vmatprep.subr.mxu0 0.0
          %314 = vmatpush1.msra.mxu0 0.0
          %315 = vmatprep.subr.mxu0 0.0
          %316 = vmatpush1.msra.mxu0 0.0
          %317 = vmatprep.subr.mxu0 0.0
          %318 = vmatpush1.msra.mxu0 0.0
          %319 = vmatprep.subr.mxu0 0.0
          %320 = vmatpush1.msra.mxu0 0.0
          %321 = vmatprep.subr.mxu0 0.0
          %322 = vmatpush1.msra.mxu0 0.0
          %323 = vmatprep.subr.mxu0 0.0
          %324 = vmatpush1.msra.mxu0 0.0
          %325 = vmatprep.subr.mxu0 0.0
          %326 = vmatpush1.msra.mxu0 0.0
          %327 = vmatprep.subr.mxu0 0.0
          %328 = vmatpush1.msra.mxu0 0.0
          %329 = vmatprep.subr.mxu0 0.0
          %330 = vmatpush1.msra.mxu0 0.0
          %331 = vmatprep.subr.mxu0 0.0
          %332 = vmatpush1.msra.mxu0 0.0
          %333 = vmatprep.subr.mxu0 0.0
          %334 = vmatpush1.msra.mxu0 0.0
          %335 = vmatprep.subr.mxu0 0.0
          %336 = vmatpush1.msra.mxu0 0.0
          %337 = vmatprep.subr.mxu0 0.0
          %338 = vmatpush1.msra.mxu0 0.0
          %339 = vmatprep.subr.mxu0 0.0
          %340 = vmatpush1.msra.mxu0 0.0
          %341 = vmatprep.subr.mxu0 0.0
          %342 = vmatpush1.msra.mxu0 0.0
          %343 = vmatprep.subr.mxu0 0.0
          %344 = vmatpush1.msra.mxu0 0.0
          %345 = vmatprep.subr.mxu0 0.0
          %346 = vmatpush1.msra.mxu0 0.0
          %347 = vmatprep.subr.mxu0 0.0
          %348 = vmatpush1.msra.mxu0 0.0
          %349 = vmatprep.subr.mxu0 0.0
          %350 = vmatpush1.msra.mxu0 0.0
          %351 = vmatprep.subr.mxu0 0.0
          %352 = vmatpush1.msra.mxu0 0.0
          %353 = vmatprep.subr.mxu0 0.0
          %354 = vmatpush1.msra.mxu0 0.0
          %355 = vmatprep.subr.mxu0 0.0
          %356 = vmatpush1.msra.mxu0 0.0
          %357 = vmatprep.subr.mxu0 0.0
          %358 = vmatpush1.msra.mxu0 0.0
          %359 = vmatprep.mubr.f32.mxu0 0.0
          %360 = vmatmul.mubr.f32.gmra.mrb[0].mxu0 %v293
          %v361 = vpop.f32.mrb[0].mxu0
          %v362 = vadd.f32 0.0, %v361
          %v363 = vpop.f32.mrb[0].mxu0
          %364 = vdwg.mxu0
          %vm365 = vcmask 31744
          %366 = vst.msk [vmem:[#allocation2] sm:$0xff] %vm365, %v362
          %s367 = scalar_lea.vmem [#allocation10], %s285
          %v368 = vld [vmem:[%s367] sm:$0xff]
          %v369 = vld [vmem:[%s367 + $0x8] sm:$0xff]
          %v370 = vld [vmem:[%s367 + $0x10] sm:$0xff]
          %v371 = vld [vmem:[%s367 + $0x18] sm:$0xff]
          %372 = vmatprep.subr.mxu0 0.0
          %373 = vmatpush1.msra.mxu0 %v368
          %374 = vmatprep.subr.mxu0 0.0
          %375 = vmatpush1.msra.mxu0 %v369
          %376 = vmatprep.subr.mxu0 0.0
          %377 = vmatpush1.msra.mxu0 %v370
          %378 = vmatprep.subr.mxu0 0.0
          %379 = vmatpush1.msra.mxu0 %v371
          %380 = vmatprep.subr.mxu0 0.0
          %381 = vmatpush1.msra.mxu0 0.0
          %382 = vmatprep.subr.mxu0 0.0
          %383 = vmatpush1.msra.mxu0 0.0
          %384 = vmatprep.subr.mxu0 0.0
          %385 = vmatpush1.msra.mxu0 0.0
          %386 = vmatprep.subr.mxu0 0.0
          %387 = vmatpush1.msra.mxu0 0.0
          %388 = vmatprep.subr.mxu0 0.0
          %389 = vmatpush1.msra.mxu0 0.0
          %390 = vmatprep.subr.mxu0 0.0
          %391 = vmatpush1.msra.mxu0 0.0
          %392 = vmatprep.subr.mxu0 0.0
          %393 = vmatpush1.msra.mxu0 0.0
          %394 = vmatprep.subr.mxu0 0.0
          %395 = vmatpush1.msra.mxu0 0.0
          %396 = vmatprep.subr.mxu0 0.0
          %397 = vmatpush1.msra.mxu0 0.0
          %398 = vmatprep.subr.mxu0 0.0
          %399 = vmatpush1.msra.mxu0 0.0
          %400 = vmatprep.subr.mxu0 0.0
          %401 = vmatpush1.msra.mxu0 0.0
          %402 = vmatprep.subr.mxu0 0.0
          %403 = vmatpush1.msra.mxu0 0.0
          %404 = vmatprep.subr.mxu0 0.0
          %405 = vmatpush1.msra.mxu0 0.0
          %406 = vmatprep.subr.mxu0 0.0
          %407 = vmatpush1.msra.mxu0 0.0
          %408 = vmatprep.subr.mxu0 0.0
          %409 = vmatpush1.msra.mxu0 0.0
          %410 = vmatprep.subr.mxu0 0.0
          %411 = vmatpush1.msra.mxu0 0.0
          %412 = vmatprep.subr.mxu0 0.0
          %413 = vmatpush1.msra.mxu0 0.0
          %414 = vmatprep.subr.mxu0 0.0
          %415 = vmatpush1.msra.mxu0 0.0
          %416 = vmatprep.subr.mxu0 0.0
          %417 = vmatpush1.msra.mxu0 0.0
          %418 = vmatprep.subr.mxu0 0.0
          %419 = vmatpush1.msra.mxu0 0.0
          %420 = vmatprep.subr.mxu0 0.0
          %421 = vmatpush1.msra.mxu0 0.0
          %422 = vmatprep.subr.mxu0 0.0
          %423 = vmatpush1.msra.mxu0 0.0
          %424 = vmatprep.subr.mxu0 0.0
          %425 = vmatpush1.msra.mxu0 0.0
          %426 = vmatprep.subr.mxu0 0.0
          %427 = vmatpush1.msra.mxu0 0.0
          %428 = vmatprep.subr.mxu0 0.0
          %429 = vmatpush1.msra.mxu0 0.0
          %430 = vmatprep.subr.mxu0 0.0
          %431 = vmatpush1.msra.mxu0 0.0
          %432 = vmatprep.subr.mxu0 0.0
          %433 = vmatpush1.msra.mxu0 0.0
          %434 = vmatprep.subr.mxu0 0.0
          %435 = vmatpush1.msra.mxu0 0.0
          %436 = vmatprep.mubr.f32.mxu0 0.0
          %437 = vmatmul.mubr.f32.gmra.mrb[0].mxu0 %v293
          %v438 = vpop.f32.mrb[0].mxu0
          %v439 = vadd.f32 0.0, %v438
          %v440 = vpop.f32.mrb[0].mxu0
          %441 = vdwg.mxu0
          %442 = vst.msk [vmem:[#allocation3] sm:$0xff] %vm365, %v439
          %s443 = scalar_lea.vmem [#allocation11], %s285
          %v444 = vld [vmem:[%s443] sm:$0xff]
          %v445 = vld [vmem:[%s443 + $0x8] sm:$0xff]
          %v446 = vld [vmem:[%s443 + $0x10] sm:$0xff]
          %v447 = vld [vmem:[%s443 + $0x18] sm:$0xff]
          %448 = vmatprep.subr.mxu0 0.0
          %449 = vmatpush1.msra.mxu0 %v444
          %450 = vmatprep.subr.mxu0 0.0
          %451 = vmatpush1.msra.mxu0 %v445
          %452 = vmatprep.subr.mxu0 0.0
          %453 = vmatpush1.msra.mxu0 %v446
          %454 = vmatprep.subr.mxu0 0.0
          %455 = vmatpush1.msra.mxu0 %v447
          %456 = vmatprep.subr.mxu0 0.0
          %457 = vmatpush1.msra.mxu0 0.0
          %458 = vmatprep.subr.mxu0 0.0
          %459 = vmatpush1.msra.mxu0 0.0
          %460 = vmatprep.subr.mxu0 0.0
          %461 = vmatpush1.msra.mxu0 0.0
          %462 = vmatprep.subr.mxu0 0.0
          %463 = vmatpush1.msra.mxu0 0.0
          %464 = vmatprep.subr.mxu0 0.0
          %465 = vmatpush1.msra.mxu0 0.0
          %466 = vmatprep.subr.mxu0 0.0
          %467 = vmatpush1.msra.mxu0 0.0
          %468 = vmatprep.subr.mxu0 0.0
          %469 = vmatpush1.msra.mxu0 0.0
          %470 = vmatprep.subr.mxu0 0.0
          %471 = vmatpush1.msra.mxu0 0.0
          %472 = vmatprep.subr.mxu0 0.0
          %473 = vmatpush1.msra.mxu0 0.0
          %474 = vmatprep.subr.mxu0 0.0
          %475 = vmatpush1.msra.mxu0 0.0
          %476 = vmatprep.subr.mxu0 0.0
          %477 = vmatpush1.msra.mxu0 0.0
          %478 = vmatprep.subr.mxu0 0.0
          %479 = vmatpush1.msra.mxu0 0.0
          %480 = vmatprep.subr.mxu0 0.0
          %481 = vmatpush1.msra.mxu0 0.0
          %482 = vmatprep.subr.mxu0 0.0
          %483 = vmatpush1.msra.mxu0 0.0
          %484 = vmatprep.subr.mxu0 0.0
          %485 = vmatpush1.msra.mxu0 0.0
          %486 = vmatprep.subr.mxu0 0.0
          %487 = vmatpush1.msra.mxu0 0.0
          %488 = vmatprep.subr.mxu0 0.0
          %489 = vmatpush1.msra.mxu0 0.0
          %490 = vmatprep.subr.mxu0 0.0
          %491 = vmatpush1.msra.mxu0 0.0
          %492 = vmatprep.subr.mxu0 0.0
          %493 = vmatpush1.msra.mxu0 0.0
          %494 = vmatprep.subr.mxu0 0.0
          %495 = vmatpush1.msra.mxu0 0.0
          %496 = vmatprep.subr.mxu0 0.0
          %497 = vmatpush1.msra.mxu0 0.0
          %498 = vmatprep.subr.mxu0 0.0
          %499 = vmatpush1.msra.mxu0 0.0
          %500 = vmatprep.subr.mxu0 0.0
          %501 = vmatpush1.msra.mxu0 0.0
          %502 = vmatprep.subr.mxu0 0.0
          %503 = vmatpush1.msra.mxu0 0.0
          %504 = vmatprep.subr.mxu0 0.0
          %505 = vmatpush1.msra.mxu0 0.0
          %506 = vmatprep.subr.mxu0 0.0
          %507 = vmatpush1.msra.mxu0 0.0
          %508 = vmatprep.subr.mxu0 0.0
          %509 = vmatpush1.msra.mxu0 0.0
          %510 = vmatprep.subr.mxu0 0.0
          %511 = vmatpush1.msra.mxu0 0.0
          %512 = vmatprep.mubr.f32.mxu0 0.0
          %513 = vmatmul.mubr.f32.gmra.mrb[0].mxu0 %v293
          %v514 = vpop.f32.mrb[0].mxu0
          %v515 = vadd.f32 0.0, %v514
          %v516 = vpop.f32.mrb[0].mxu0
          %517 = vdwg.mxu0
          %518 = vst.msk [vmem:[#allocation4] sm:$0xff] %vm365, %v515
        $region56: #{tpu_custom_call.1} parent=35 // pred_fallthru
          _
        %s519 = smul.u32 %s30, 8
        %s520 = scalar_lea.vmem [#allocation2], %s519
        %v521 = vld [vmem:[%s520] sm:$0xff]
        %v522 = vld [vmem:[#allocation3] sm:$0xff]
        %v523 = vld [vmem:[#allocation4] sm:$0xff]
        %vm524 = vcmask 31744
        %v526 = vsel %vm524, %v521, 0
        %v529 = vsel %vm524, %v522, 0
        %531 = vmatprep.subr.mxu0 0.0
        %532 = vmatpush1.xpose.msra.mxu0 %v529
        %533 = vmatprep.subr.mxu0 0.0
        %534 = vmatpush1.xpose.msra.mxu0 0.0
        %535 = vmatprep.subr.mxu0 0.0
        %536 = vmatpush1.xpose.msra.mxu0 0.0
        %537 = vmatprep.subr.mxu0 0.0
        %538 = vmatpush1.xpose.msra.mxu0 0.0
        %539 = vmatprep.subr.mxu0 0.0
        %540 = vmatpush1.xpose.msra.mxu0 0.0
        %541 = vmatprep.subr.mxu0 0.0
        %542 = vmatpush1.xpose.msra.mxu0 0.0
        %543 = vmatprep.subr.mxu0 0.0
        %544 = vmatpush1.xpose.msra.mxu0 0.0
        %545 = vmatprep.subr.mxu0 0.0
        %546 = vmatpush1.xpose.msra.mxu0 0.0
        %547 = vmatprep.subr.mxu0 0.0
        %548 = vmatpush1.xpose.msra.mxu0 0.0
        %549 = vmatprep.subr.mxu0 0.0
        %550 = vmatpush1.xpose.msra.mxu0 0.0
        %551 = vmatprep.subr.mxu0 0.0
        %552 = vmatpush1.xpose.msra.mxu0 0.0
        %553 = vmatprep.subr.mxu0 0.0
        %554 = vmatpush1.xpose.msra.mxu0 0.0
        %555 = vmatprep.subr.mxu0 0.0
        %556 = vmatpush1.xpose.msra.mxu0 0.0
        %557 = vmatprep.subr.mxu0 0.0
        %558 = vmatpush1.xpose.msra.mxu0 0.0
        %559 = vmatprep.subr.mxu0 0.0
        %560 = vmatpush1.xpose.msra.mxu0 0.0
        %561 = vmatprep.subr.mxu0 0.0
        %562 = vmatpush1.xpose.msra.mxu0 0.0
        %563 = vmatprep.subr.mxu0 0.0
        %564 = vmatpush1.xpose.msra.mxu0 0.0
        %565 = vmatprep.subr.mxu0 0.0
        %566 = vmatpush1.xpose.msra.mxu0 0.0
        %567 = vmatprep.subr.mxu0 0.0
        %568 = vmatpush1.xpose.msra.mxu0 0.0
        %569 = vmatprep.subr.mxu0 0.0
        %570 = vmatpush1.xpose.msra.mxu0 0.0
        %571 = vmatprep.subr.mxu0 0.0
        %572 = vmatpush1.xpose.msra.mxu0 0.0
        %573 = vmatprep.subr.mxu0 0.0
        %574 = vmatpush1.xpose.msra.mxu0 0.0
        %575 = vmatprep.subr.mxu0 0.0
        %576 = vmatpush1.xpose.msra.mxu0 0.0
        %577 = vmatprep.subr.mxu0 0.0
        %578 = vmatpush1.xpose.msra.mxu0 0.0
        %579 = vmatprep.subr.mxu0 0.0
        %580 = vmatpush1.xpose.msra.mxu0 0.0
        %581 = vmatprep.subr.mxu0 0.0
        %582 = vmatpush1.xpose.msra.mxu0 0.0
        %583 = vmatprep.subr.mxu0 0.0
        %584 = vmatpush1.xpose.msra.mxu0 0.0
        %585 = vmatprep.subr.mxu0 0.0
        %586 = vmatpush1.xpose.msra.mxu0 0.0
        %587 = vmatprep.subr.mxu0 0.0
        %588 = vmatpush1.xpose.msra.mxu0 0.0
        %589 = vmatprep.subr.mxu0 0.0
        %590 = vmatpush1.xpose.msra.mxu0 0.0
        %591 = vmatprep.subr.mxu0 0.0
        %592 = vmatpush1.xpose.msra.mxu0 0.0
        %593 = vmatprep.subr.mxu0 0.0
        %594 = vmatpush1.xpose.msra.mxu0 0.0
        %595 = vmatprep.mubr.f32.mxu0 0.0
        %596 = vmatmul.mubr.f32.gmra.mrb[0].mxu0 %v526
        %v597 = vpop.f32.mrb[0].mxu0
        %v598 = vadd.f32 0.0, %v597
        %v599 = vpop.f32.mrb[0].mxu0
        %600 = vdwg.mxu0
        %vm601 = vcmask 64512
        %v602 = vsel %vm601, %v598, -inf
        %603 = vmax.xlane.f32.xlu0 %v602
        %v604 = vpop.xlane.xlu0 %603
        %v605 = vsub.f32 %v598, %v604
        %v606 = vmul.f32 %v605, 1.442695
        %v607 = vpow.pop %v606
        %v608 = vsel %vm601, %v607, 0.0
        %609 = vadd.xlane.f32.xlu0 %v608
        %v610 = vpop.xlane.xlu0 %609
        %v612 = vsel %vm601, %v607, 0
        %614 = vmatprep.subr.mxu0 0.0
        %615 = vmatpush1.msra.mxu0 %v523
        %616 = vmatprep.subr.mxu0 0.0
        %617 = vmatpush1.msra.mxu0 0.0
        %618 = vmatprep.subr.mxu0 0.0
        %619 = vmatpush1.msra.mxu0 0.0
        %620 = vmatprep.subr.mxu0 0.0
        %621 = vmatpush1.msra.mxu0 0.0
        %622 = vmatprep.subr.mxu0 0.0
        %623 = vmatpush1.msra.mxu0 0.0
        %624 = vmatprep.subr.mxu0 0.0
        %625 = vmatpush1.msra.mxu0 0.0
        %626 = vmatprep.subr.mxu0 0.0
        %627 = vmatpush1.msra.mxu0 0.0
        %628 = vmatprep.subr.mxu0 0.0
        %629 = vmatpush1.msra.mxu0 0.0
        %630 = vmatprep.subr.mxu0 0.0
        %631 = vmatpush1.msra.mxu0 0.0
        %632 = vmatprep.subr.mxu0 0.0
        %633 = vmatpush1.msra.mxu0 0.0
        %634 = vmatprep.subr.mxu0 0.0
        %635 = vmatpush1.msra.mxu0 0.0
        %636 = vmatprep.subr.mxu0 0.0
        %637 = vmatpush1.msra.mxu0 0.0
        %638 = vmatprep.subr.mxu0 0.0
        %639 = vmatpush1.msra.mxu0 0.0
        %640 = vmatprep.subr.mxu0 0.0
        %641 = vmatpush1.msra.mxu0 0.0
        %642 = vmatprep.subr.mxu0 0.0
        %643 = vmatpush1.msra.mxu0 0.0
        %644 = vmatprep.subr.mxu0 0.0
        %645 = vmatpush1.msra.mxu0 0.0
        %646 = vmatprep.subr.mxu0 0.0
        %647 = vmatpush1.msra.mxu0 0.0
        %648 = vmatprep.subr.mxu0 0.0
        %649 = vmatpush1.msra.mxu0 0.0
        %650 = vmatprep.subr.mxu0 0.0
        %651 = vmatpush1.msra.mxu0 0.0
        %652 = vmatprep.subr.mxu0 0.0
        %653 = vmatpush1.msra.mxu0 0.0
        %654 = vmatprep.subr.mxu0 0.0
        %655 = vmatpush1.msra.mxu0 0.0
        %656 = vmatprep.subr.mxu0 0.0
        %657 = vmatpush1.msra.mxu0 0.0
        %658 = vmatprep.subr.mxu0 0.0
        %659 = vmatpush1.msra.mxu0 0.0
        %660 = vmatprep.subr.mxu0 0.0
        %661 = vmatpush1.msra.mxu0 0.0
        %662 = vmatprep.subr.mxu0 0.0
        %663 = vmatpush1.msra.mxu0 0.0
        %664 = vmatprep.subr.mxu0 0.0
        %665 = vmatpush1.msra.mxu0 0.0
        %666 = vmatprep.subr.mxu0 0.0
        %667 = vmatpush1.msra.mxu0 0.0
        %668 = vmatprep.subr.mxu0 0.0
        %669 = vmatpush1.msra.mxu0 0.0
        %670 = vmatprep.subr.mxu0 0.0
        %671 = vmatpush1.msra.mxu0 0.0
        %672 = vmatprep.subr.mxu0 0.0
        %673 = vmatpush1.msra.mxu0 0.0
        %674 = vmatprep.subr.mxu0 0.0
        %675 = vmatpush1.msra.mxu0 0.0
        %676 = vmatprep.subr.mxu0 0.0
        %677 = vmatpush1.msra.mxu0 0.0
        %678 = vmatprep.mubr.f32.mxu0 0.0
        %679 = vmatmul.mubr.f32.gmra.mrb[0].mxu0 %v612
        %v680 = vpop.f32.mrb[0].mxu0
        %v681 = vadd.f32 0.0, %v680
        %v682 = vpop.f32.mrb[0].mxu0
        %683 = vdwg.mxu0
        %v684 = vrcp.pop %v610
        %v685 = vmul.f32 %v681, %v684
        %686 = vst.msk [vmem:[%s279] sm:$0xff] %vm524, %v685
        %s687 = sand.u32 %s143, 1
        %s688 = scalar_lea.sflag [#allocation7], %s687
        %s689 = sand.u32 %s143, 1
        %s690 = smul.addr %s689, 8
        %s691 = scalar_lea.vmem [#allocation13], %s690
        // Predicated region
        $region57: #{tpu_custom_call.1} parent=35 // pred_check
          %p692 = pneg %p153
        $region58: #{tpu_custom_call.1} parent=35 // pred_check_branch
          %694 = sbr.rel (%p692) target = $region60
        $region59: #{tpu_custom_call.1} parent=35 // pred_region
          %s696 = ssub.s32 128, 128
          %697 = vsyncadd %s688, %s696
          %s698 = sadd.s32 %s30, %s29
          %s699 = smul.addr %s28, 8
          %s700 = sadd.s32 %s698, %s699
          %s701 = smul.addr %s700, 128
          %s702 = scalar_lea.hbm %s4, %s701
          %s704 = sshll.u32 %s691, 4
          %s705 = int_to_ptr.vmem [resolvable:$true] %s704
          %707 = dma.vmem_to_hbm [thread:$0]  %s705, 128, %s702, %s688
        $region60: #{tpu_custom_call.1} parent=35 // pred_fallthru
          _
      $region36: #{tpu_custom_call.1} parent=5 // pred_fallthru
        _
      %p708 = scmp.le.s32.totalorder 2, %s18
      // Predicated region
      $region61: #{tpu_custom_call.1} parent=5 // pred_check
        %p709 = pneg %p708
      $region62: #{tpu_custom_call.1} parent=5 // pred_check_branch
        %711 = sbr.rel (%p709) target = $region64
      $region63: #{tpu_custom_call.1} parent=5 // pred_region
        %s712 = ssub.s32 %s18, 2
        // Predicated region
        $region65: #{tpu_custom_call.1} parent=63 // pred_check
          %p713 = pneg %p159
        $region66: #{tpu_custom_call.1} parent=63 // pred_check_branch
          %715 = sbr.rel (%p713) target = $region68
        $region67: #{tpu_custom_call.1} parent=63 // pred_region
          %s716 = sand.u32 %s144, 1
          %s717 = scalar_lea.sflag [#allocation7], %s716
          %s718 = sand.u32 %s144, 1
          %s719 = smul.addr %s718, 8
          %s720 = scalar_lea.vmem [#allocation13], %s719
          %721 = dma.done %s717, 128
        $region68: #{tpu_custom_call.1} parent=63 // pred_fallthru
          _
      $region64: #{tpu_custom_call.1} parent=5 // pred_fallthru
        _
    $region6: #{tpu_custom_call.1} parent=1 // loop_footer
      %s22 = sadd.s32 1, %s18
    $region7: #{tpu_custom_call.1} parent=1 // loop_footer_branch
      %17 = sbr.rel target = $region3
    $region8: #{tpu_custom_call.1} parent=1 // loop_exit
      _
    %722 = vsyncpa [#allocation6], 1
    %s723 = scalar_lea.sflag [#allocation6], 1
    %724 = vsyncpa %s723, 1
    %725 = vsyncpa [#allocation9], 1
    %726 = vsyncpa [#allocation12], 1
    %727 = vsyncpa [#allocation7], 1
    %s728 = scalar_lea.sflag [#allocation7], 1
    %729 = vsyncpa %s728, 1

</llo_original>
